<compile_context>
chip_gen: v6e
topology: v6e:2x2x1
jax: 0.10.0
libtpu: 0.0.40
codegen_flags: <defaults>
</compile_context>

<pallas_src>
import sys
from functools import partial

import jax
import jax.numpy as jnp
from jax.experimental import pallas as pl
from jax.experimental.pallas import tpu as pltpu

HIDDEN_DIM = 16                 # config.hidden_dim
N = 2 * HIDDEN_DIM              # hidden_dim * 2
EPS = sys.float_info.epsilon    # torch uses sys.float_info.epsilon


# ---------------------------------------------------------------------------
# Parameter preparation (done once per model, outside the per-step hot path).
# All derived matrices are small (<= 256x256) and stay VMEM-resident.
# ---------------------------------------------------------------------------
def prepare_attention_params(w_h, w_dec, b_dec, v, w_c, t_k,
                             act_dtype=jnp.float32):
    n = w_dec.shape[0]
    eye_t = jnp.eye(t_k, dtype=jnp.float32)
    wh_block = jnp.kron(eye_t, w_h)                            # (T*N, T*N) block-diag W_h
    wdec_tiled = jnp.tile(w_dec, (1, t_k))                     # (N, T*N)  dec_fea tiled over T
    b_tiled = jnp.tile(b_dec.reshape(1, n), (1, t_k))          # (1, T*N)  bias tiled (kept f32)
    wc_expand = jnp.kron(eye_t, w_c.reshape(1, n))             # (T, T*N)  coverage -> feature
    vsel = jnp.kron(eye_t, v.reshape(n, 1))                    # (T*N, T)  per-t score projection
    rep = jnp.kron(eye_t, jnp.ones((1, n), jnp.float32))       # (T, T*N)  attn -> per-lane weight
    fold = jnp.tile(jnp.eye(n, dtype=jnp.float32), (t_k, 1))   # (T*N, N)  sum over T groups
    cast = lambda x: x.astype(act_dtype)
    return (cast(wh_block), cast(wdec_tiled), b_tiled.astype(jnp.float32),
            cast(wc_expand), cast(vsel), cast(rep), cast(fold))


# ---------------------------------------------------------------------------
# Kernel: everything works on the lane-dense flat layout (B, T*N).
# ---------------------------------------------------------------------------
def attention_kernel(s_ref, enc_ref, mask_ref, cov_ref,
                     whb_ref, wdt_ref, bt_ref, wce_ref, vsel_ref, rep_ref,
                     fold_ref,
                     c_t_ref, attn_ref, cov_out_ref):
    act = enc_ref.dtype                      # activation dtype (f32 or bf16)
    enc = enc_ref[...]                       # (bb, T*N)  encoder outputs, flat
    cov = cov_ref[...]                       # (bb, T)    f32 (aliased with cov_out)

    # Feature assembly: three MXU matmuls, f32 accumulation.
    dec_t = jnp.dot(s_ref[...].astype(act), wdt_ref[...],
                    preferred_element_type=jnp.float32)          # decode_proj, tiled over T
    enc_feat = jnp.dot(enc, whb_ref[...],
                       preferred_element_type=jnp.float32)       # W_h h_i, computed in-kernel
    cov_feat = jnp.dot(cov.astype(act), wce_ref[...],
                       preferred_element_type=jnp.float32)       # W_c coverage
    feats = enc_feat + dec_t + bt_ref[...] + cov_feat            # (bb, T*N) f32

    # tanh over the bulk tensor in the activation dtype (full 128-lane width).
    e = jnp.tanh(feats.astype(act))

    # scores[b, t] = v . e[b, t, :]  -> one MXU matmul with kron(I_T, v).
    scores = jnp.dot(e, vsel_ref[...],
                     preferred_element_type=jnp.float32)         # (bb, T) f32

    # Masked softmax with the renormalization folded into a single divide:
    #   attn = (exp(s-m)*mask) / (sum(exp(s-m)*mask) + EPS*sum(exp(s-m)))
    # (algebraically identical to softmax -> mask -> renorm; fully-masked rows
    #  are safe since denom >= EPS*sum(ex) > 0.)
    m = jnp.max(scores, axis=1, keepdims=True)
    ex = jnp.exp(scores - m)
    masked = ex * mask_ref[...]
    denom = (jnp.sum(masked, axis=1, keepdims=True)
             + EPS * jnp.sum(ex, axis=1, keepdims=True))
    attn = masked / denom                                        # (bb, T) f32

    # c_t[b, n] = sum_t attn[b, t] * enc[b, t, n]:
    #   expand attn over lanes with kron(I_T, ones) (exact 0/1 selection),
    #   multiply elementwise at full width, fold T groups with one matmul.
    attn_e = jnp.dot(attn.astype(act), rep_ref[...],
                     preferred_element_type=jnp.float32)         # (bb, T*N)
    weighted = attn_e.astype(act) * enc
    c_t = jnp.dot(weighted, fold_ref[...],
                  preferred_element_type=jnp.float32)            # (bb, N) f32

    c_t_ref[...] = c_t
    attn_ref[...] = attn
    cov_out_ref[...] = cov + attn                                # coverage update (in place)


# ---------------------------------------------------------------------------
# Wrapper
# ---------------------------------------------------------------------------
@partial(jax.jit, static_argnames=("batch_block",), donate_argnums=(4,))
def attention_forward(params, s_t_hat, encoder_outputs, enc_padding_mask,
                      coverage, *, batch_block=512):
    B, T, Nn = encoder_outputs.shape
    TN = T * Nn
    enc_flat = encoder_outputs.reshape(B, TN)        # contiguous -> free reinterpretation
    wh_block, wdec_tiled, b_tiled, wc_expand, vsel, rep, fold = params

    inputs = (s_t_hat, enc_flat, enc_padding_mask, coverage,
              wh_block, wdec_tiled, b_tiled, wc_expand, vsel, rep, fold)

    # -------- gridless path: whole problem resident in VMEM, no pipeline -----
    if B <= batch_block:
        out_shapes = (jax.ShapeDtypeStruct((B, Nn), jnp.float32),
                      jax.ShapeDtypeStruct((B, T), jnp.float32),
                      jax.ShapeDtypeStruct((B, T), jnp.float32))
        vmem = pl.BlockSpec(memory_space=pltpu.MemorySpace.VMEM)
        return pl.pallas_call(
            attention_kernel,
            out_shape=out_shapes,
            in_specs=[vmem] * len(inputs),
            out_specs=(vmem, vmem, vmem),
            input_output_aliases={3: 2},              # coverage in -> coverage out
        )(*inputs)

    # -------- batched path: fat batch blocks, weights pinned in VMEM ---------
    bb = batch_block
    pad = (-B) % bb
    if pad:  # fully-masked padded rows are numerically safe; outputs are sliced
        zf = lambda x: jnp.pad(x, ((0, pad), (0, 0)))
        s_t_hat, enc_flat = zf(s_t_hat), zf(enc_flat)
        enc_padding_mask, coverage = zf(enc_padding_mask), zf(coverage)
        inputs = (s_t_hat, enc_flat, enc_padding_mask, coverage,
                  wh_block, wdec_tiled, b_tiled, wc_expand, vsel, rep, fold)
    Bp = B + pad

    row = lambda i: (i, 0)
    pin = lambda i: (0, 0)
    in_specs = [
        pl.BlockSpec((bb, Nn), row),       # s_t_hat
        pl.BlockSpec((bb, TN), row),       # encoder_outputs (flat, lane-dense)
        pl.BlockSpec((bb, T), row),        # enc_padding_mask
        pl.BlockSpec((bb, T), row),        # coverage
        pl.BlockSpec((TN, TN), pin),       # kron(I_T, W_h)        (resident)
        pl.BlockSpec((Nn, TN), pin),       # tiled W_dec           (resident)
        pl.BlockSpec((1, TN), pin),        # tiled bias            (resident)
        pl.BlockSpec((T, TN), pin),        # kron(I_T, w_c)        (resident)
        pl.BlockSpec((TN, T), pin),        # kron(I_T, v)          (resident)
        pl.BlockSpec((T, TN), pin),        # kron(I_T, ones)       (resident)
        pl.BlockSpec((TN, Nn), pin),       # fold                  (resident)
    ]
    out_specs = (
        pl.BlockSpec((bb, Nn), row),       # c_t
        pl.BlockSpec((bb, T), row),        # attn_dist
        pl.BlockSpec((bb, T), row),        # coverage out
    )
    out_shapes = (jax.ShapeDtypeStruct((Bp, Nn), jnp.float32),
                  jax.ShapeDtypeStruct((Bp, T), jnp.float32),
                  jax.ShapeDtypeStruct((Bp, T), jnp.float32))

    out = pl.pallas_call(
        attention_kernel,
        out_shape=out_shapes,
        grid=(Bp // bb,),
        in_specs=in_specs,
        out_specs=out_specs,
        input_output_aliases={3: 2},
        compiler_params=pltpu.CompilerParams(
            dimension_semantics=("parallel",)),       # batch blocks shard across TCs (v7x)
    )(*inputs)

    if pad:
        out = tuple(o[:B] for o in out)
    return out


# ---------------------------------------------------------------------------
# Pure-JAX reference (faithful port of the PyTorch forward)
# ---------------------------------------------------------------------------
def attention_reference(s_t_hat, encoder_outputs, enc_padding_mask, coverage,
                        w_h, w_dec, b_dec, v, w_c):
    B, T, Nn = encoder_outputs.shape
    encoder_feature = encoder_outputs.reshape(-1, Nn) @ w_h     # W_h h_i
    dec_fea = s_t_hat @ w_dec + b_dec
    feats = encoder_feature.reshape(B, T, Nn) + dec_fea[:, None, :]
    feats = feats + coverage[:, :, None] * w_c.reshape(1, 1, Nn)
    e = jnp.tanh(feats)
    scores = jnp.sum(e * v.reshape(1, 1, Nn), axis=-1)
    sm = jax.nn.softmax(scores, axis=1)
    attn_ = sm * enc_padding_mask
    norm = jnp.sum(attn_, axis=1, keepdims=True)
    attn = attn_ / (norm + EPS)
    c_t = jnp.einsum('bt,btn->bn', attn, encoder_outputs)
    return c_t, attn, coverage + attn


# ---------------------------------------------------------------------------
# Test harness
# ---------------------------------------------------------------------------
def _make_inputs(B, T, key):
    k = jax.random.split(key, 9)
    s_t_hat = jax.random.normal(k[0], (B, N), jnp.float32)
    encoder_outputs = jax.random.normal(k[1], (B, T, N), jnp.float32)
    lengths = jax.random.randint(k[2], (B,), 1, T + 1)
    enc_padding_mask = (jnp.arange(T)[None, :] < lengths[:, None]).astype(jnp.float32)
    coverage = jax.random.uniform(k[3], (B, T), jnp.float32)
    scale = (2.0 / (N + N)) ** 0.5
    w_h = jax.random.normal(k[4], (N, N), jnp.float32) * scale
    w_dec = jax.random.normal(k[5], (N, N), jnp.float32) * scale
    b_dec = jax.random.normal(k[6], (1, N), jnp.float32) * 0.01
    v = jax.random.normal(k[7], (1, N), jnp.float32) * (2.0 / (N + 1)) ** 0.5
    w_c = jax.random.normal(k[8], (1, N), jnp.float32) * (2.0 / (1 + N)) ** 0.5
    return (s_t_hat, encoder_outputs, enc_padding_mask, coverage,
            w_h, w_dec, b_dec, v, w_c)


def _check(args, act_dtype, batch_block, atol, rtol):
    s, enc, mask, cov, w_h, w_dec, b_dec, v, w_c = args
    T = enc.shape[1]

    # Reference is computed FIRST (coverage is donated by the kernel call) and
    # on inputs rounded to the activation dtype, so only compute error remains.
    rnd = lambda x: x.astype(act_dtype).astype(jnp.float32)
    ref = attention_reference(rnd(s), rnd(enc), mask, cov,
                              rnd(w_h), rnd(w_dec), b_dec, rnd(v), rnd(w_c))

    params = prepare_attention_params(w_h, w_dec, b_dec, v, w_c, T, act_dtype)
    out = attention_forward(params, s, enc.astype(act_dtype), mask, cov,
                            batch_block=batch_block)
    jax.block_until_ready(out)

    for name, o, r in zip(("c_t", "attn_dist", "coverage"), out, ref):
        err = float(jnp.max(jnp.abs(o - r)))
        assert jnp.allclose(o, r, atol=atol, rtol=rtol), (name, err)
    return True


if __name__ == "__main__":
    key = jax.random.PRNGKey(0)
    k_small, k_big = jax.random.split(key)

    # Small, module-scale shapes (B=2, T=8, 2H=32): gridless, all-f32, tight check.
    _check(_make_inputs(2, 8, k_small), jnp.float32, 512, 2e-4, 2e-3)

    # Larger batch: bf16 activations, grid of 512-row batch blocks (grid=(2,),
    # "parallel" so both v7x TensorCores get a block); loose check vs f32 ref.
    _check(_make_inputs(1024, 8, k_big), jnp.bfloat16, 512, 6e-2, 6e-2)

    print("KERNEL_OK")
</pallas_src>

<mosaic_0001>
module attributes {stable_mosaic.version = 11 : i64} {
  func.func @attention_kernel(%arg0: memref<2x32xf32, #tpu.memory_space<vmem>>, %arg1: memref<2x256xf32, #tpu.memory_space<vmem>>, %arg2: memref<2x8xf32, #tpu.memory_space<vmem>>, %arg3: memref<2x8xf32, #tpu.memory_space<vmem>>, %arg4: memref<256x256xf32, #tpu.memory_space<vmem>>, %arg5: memref<32x256xf32, #tpu.memory_space<vmem>>, %arg6: memref<1x256xf32, #tpu.memory_space<vmem>>, %arg7: memref<8x256xf32, #tpu.memory_space<vmem>>, %arg8: memref<256x8xf32, #tpu.memory_space<vmem>>, %arg9: memref<8x256xf32, #tpu.memory_space<vmem>>, %arg10: memref<256x32xf32, #tpu.memory_space<vmem>>, %arg11: memref<2x32xf32, #tpu.memory_space<vmem>>, %arg12: memref<2x8xf32, #tpu.memory_space<vmem>>, %arg13: memref<2x8xf32, #tpu.memory_space<vmem>>) attributes {dimension_semantics = [], scalar_prefetch = 0 : i64, scratch_operands = 0 : i64, tpu.core_type = #tpu.core_type<tc>} {
    %c0 = arith.constant 0 : index
    %c0_0 = arith.constant 0 : index
    %0 = vector.load %arg1[%c0, %c0_0] : memref<2x256xf32, #tpu.memory_space<vmem>>, vector<2x256xf32>
    %c0_1 = arith.constant 0 : index
    %c0_2 = arith.constant 0 : index
    %1 = vector.load %arg3[%c0_1, %c0_2] : memref<2x8xf32, #tpu.memory_space<vmem>>, vector<2x8xf32>
    %c0_3 = arith.constant 0 : index
    %c0_4 = arith.constant 0 : index
    %2 = vector.load %arg0[%c0_3, %c0_4] : memref<2x32xf32, #tpu.memory_space<vmem>>, vector<2x32xf32>
    %c0_5 = arith.constant 0 : index
    %c0_6 = arith.constant 0 : index
    %3 = vector.load %arg5[%c0_5, %c0_6] : memref<32x256xf32, #tpu.memory_space<vmem>>, vector<32x256xf32>
    %cst = arith.constant dense<0.000000e+00> : vector<2x256xf32>
    %4 = tpu.matmul %2, %3, %cst {dimension_numbers = #tpu.dot_dimension_numbers<[1], [0], [0], [1], [0, 0, 1, 1], [], []>} : vector<2x32xf32>, vector<32x256xf32>, vector<2x256xf32> -> vector<2x256xf32>
    %c0_7 = arith.constant 0 : index
    %c0_8 = arith.constant 0 : index
    %5 = vector.load %arg4[%c0_7, %c0_8] : memref<256x256xf32, #tpu.memory_space<vmem>>, vector<256x256xf32>
    %cst_9 = arith.constant dense<0.000000e+00> : vector<2x256xf32>
    %6 = tpu.matmul %0, %5, %cst_9 {dimension_numbers = #tpu.dot_dimension_numbers<[1], [0], [0], [1], [0, 0, 1, 1], [], []>} : vector<2x256xf32>, vector<256x256xf32>, vector<2x256xf32> -> vector<2x256xf32>
    %c0_10 = arith.constant 0 : index
    %c0_11 = arith.constant 0 : index
    %7 = vector.load %arg7[%c0_10, %c0_11] : memref<8x256xf32, #tpu.memory_space<vmem>>, vector<8x256xf32>
    %cst_12 = arith.constant dense<0.000000e+00> : vector<2x256xf32>
    %8 = tpu.matmul %1, %7, %cst_12 {dimension_numbers = #tpu.dot_dimension_numbers<[1], [0], [0], [1], [0, 0, 1, 1], [], []>} : vector<2x8xf32>, vector<8x256xf32>, vector<2x256xf32> -> vector<2x256xf32>
    %9 = arith.addf %6, %4 : vector<2x256xf32>
    %c0_13 = arith.constant 0 : index
    %c0_14 = arith.constant 0 : index
    %10 = vector.load %arg6[%c0_13, %c0_14] : memref<1x256xf32, #tpu.memory_space<vmem>>, vector<1x256xf32>
    %11 = vector.broadcast %10 : vector<1x256xf32> to vector<2x256xf32>
    %12 = arith.addf %9, %11 : vector<2x256xf32>
    %13 = arith.addf %12, %8 : vector<2x256xf32>
    %14 = math.tanh %13 : vector<2x256xf32>
    %c0_15 = arith.constant 0 : index
    %c0_16 = arith.constant 0 : index
    %15 = vector.load %arg8[%c0_15, %c0_16] : memref<256x8xf32, #tpu.memory_space<vmem>>, vector<256x8xf32>
    %cst_17 = arith.constant dense<0.000000e+00> : vector<2x8xf32>
    %16 = tpu.matmul %14, %15, %cst_17 {dimension_numbers = #tpu.dot_dimension_numbers<[1], [0], [0], [1], [0, 0, 1, 1], [], []>} : vector<2x256xf32>, vector<256x8xf32>, vector<2x8xf32> -> vector<2x8xf32>
    %cst_18 = arith.constant dense<0xFF800000> : vector<2xf32>
    %17 = vector.multi_reduction <maximumf>, %16, %cst_18 [1] : vector<2x8xf32> to vector<2xf32>
    %18 = vector.shape_cast %17 : vector<2xf32> to vector<2x1xf32>
    %19 = vector.broadcast %18 : vector<2x1xf32> to vector<2x8xf32>
    %20 = arith.subf %16, %19 : vector<2x8xf32>
    %21 = math.exp %20 : vector<2x8xf32>
    %c0_19 = arith.constant 0 : index
    %c0_20 = arith.constant 0 : index
    %22 = vector.load %arg2[%c0_19, %c0_20] : memref<2x8xf32, #tpu.memory_space<vmem>>, vector<2x8xf32>
    %23 = arith.mulf %21, %22 : vector<2x8xf32>
    %cst_21 = arith.constant dense<0.000000e+00> : vector<2xf32>
    %24 = vector.multi_reduction <add>, %23, %cst_21 [1] : vector<2x8xf32> to vector<2xf32>
    %25 = vector.shape_cast %24 : vector<2xf32> to vector<2x1xf32>
    %cst_22 = arith.constant dense<0.000000e+00> : vector<2xf32>
    %26 = vector.multi_reduction <add>, %21, %cst_22 [1] : vector<2x8xf32> to vector<2xf32>
    %27 = vector.shape_cast %26 : vector<2xf32> to vector<2x1xf32>
    %cst_23 = arith.constant 2.22044605E-16 : f32
    %28 = vector.broadcast %cst_23 : f32 to vector<2x1xf32>
    %29 = arith.mulf %28, %27 : vector<2x1xf32>
    %30 = arith.addf %25, %29 : vector<2x1xf32>
    %31 = vector.broadcast %30 : vector<2x1xf32> to vector<2x8xf32>
    %32 = arith.divf %23, %31 : vector<2x8xf32>
    %c0_24 = arith.constant 0 : index
    %c0_25 = arith.constant 0 : index
    %33 = vector.load %arg9[%c0_24, %c0_25] : memref<8x256xf32, #tpu.memory_space<vmem>>, vector<8x256xf32>
    %cst_26 = arith.constant dense<0.000000e+00> : vector<2x256xf32>
    %34 = tpu.matmul %32, %33, %cst_26 {dimension_numbers = #tpu.dot_dimension_numbers<[1], [0], [0], [1], [0, 0, 1, 1], [], []>} : vector<2x8xf32>, vector<8x256xf32>, vector<2x256xf32> -> vector<2x256xf32>
    %35 = arith.mulf %34, %0 : vector<2x256xf32>
    %c0_27 = arith.constant 0 : index
    %c0_28 = arith.constant 0 : index
    %36 = vector.load %arg10[%c0_27, %c0_28] : memref<256x32xf32, #tpu.memory_space<vmem>>, vector<256x32xf32>
    %cst_29 = arith.constant dense<0.000000e+00> : vector<2x32xf32>
    %37 = tpu.matmul %35, %36, %cst_29 {dimension_numbers = #tpu.dot_dimension_numbers<[1], [0], [0], [1], [0, 0, 1, 1], [], []>} : vector<2x256xf32>, vector<256x32xf32>, vector<2x32xf32> -> vector<2x32xf32>
    %c0_30 = arith.constant 0 : index
    %c0_31 = arith.constant 0 : index
    %38 = vector.load %arg11[%c0_30, %c0_31] : memref<2x32xf32, #tpu.memory_space<vmem>>, vector<2x32xf32>
    tpu.vector_store %arg11[%c0_30, %c0_31], %37 {strides = array<i32>} : memref<2x32xf32, #tpu.memory_space<vmem>>, vector<2x32xf32>,
    %c0_32 = arith.constant 0 : index
    %c0_33 = arith.constant 0 : index
    %39 = vector.load %arg12[%c0_32, %c0_33] : memref<2x8xf32, #tpu.memory_space<vmem>>, vector<2x8xf32>
    tpu.vector_store %arg12[%c0_32, %c0_33], %32 {strides = array<i32>} : memref<2x8xf32, #tpu.memory_space<vmem>>, vector<2x8xf32>,
    %40 = arith.addf %1, %32 : vector<2x8xf32>
    %c0_34 = arith.constant 0 : index
    %c0_35 = arith.constant 0 : index
    %41 = vector.load %arg13[%c0_34, %c0_35] : memref<2x8xf32, #tpu.memory_space<vmem>>, vector<2x8xf32>
    tpu.vector_store %arg13[%c0_34, %c0_35], %40 {strides = array<i32>} : memref<2x8xf32, #tpu.memory_space<vmem>>, vector<2x8xf32>,
    return
  }
}

</mosaic_0001>

<llo_original>
// kernel: attention_forward.1
$region0: #{attention_forward.1}
  #allocation0 [shape = 'u32[]', space=smem, size = 0x4, offset = 0x4, fixed_abs, tag = 'smem constant byte address 0x4 - core index']
  #allocation1 [shape = 'u32[144,128]{1,0:T(1,128)}', space=vmem, size = 0x12000, scoped, tag = 'internal scratch']
  %s0 = inlined_call_operand.vmem [shape: f32[2,32], index: 0, kind: input, shape index: {}]
  %s1 = inlined_call_operand.vmem [shape: f32[2,256], index: 1, kind: input, shape index: {}]
  %s2 = inlined_call_operand.vmem [shape: f32[2,8], index: 2, kind: input, shape index: {}]
  %s3 = inlined_call_operand.vmem [shape: f32[2,8], index: 3, kind: input, shape index: {}, may-alias: {3,13}]
  %s4 = inlined_call_operand.vmem [shape: f32[256,256], index: 4, kind: input, shape index: {}]
  %s5 = inlined_call_operand.vmem [shape: f32[32,256], index: 5, kind: input, shape index: {}]
  %s6 = inlined_call_operand.vmem [shape: f32[1,256], index: 6, kind: input, shape index: {}]
  %s7 = inlined_call_operand.vmem [shape: f32[8,256], index: 7, kind: input, shape index: {}]
  %s8 = inlined_call_operand.vmem [shape: f32[256,8], index: 8, kind: input, shape index: {}]
  %s9 = inlined_call_operand.vmem [shape: f32[8,256], index: 9, kind: input, shape index: {}]
  %s10 = inlined_call_operand.vmem [shape: f32[256,32], index: 10, kind: input, shape index: {}]
  %s11 = inlined_call_operand.hbm [shape: f32[2,32], index: 11, kind: output, shape index: {0}]
  %s12 = inlined_call_operand.hbm [shape: f32[2,8], index: 12, kind: output, shape index: {1}]
  %s13 = inlined_call_operand.vmem [shape: f32[2,8], index: 13, kind: output, shape index: {2}, may-alias: {3,13}]
  %14 = xla_tuple %s11, %s12, %s13
  %s15 = sld [smem:[#allocation0]]
  $region70: #{attention_forward.1} parent=0
    _
  %s17 = ssub.s32 1, %s15
  %s18 = scalar_select 0, %s17, %s15
  $region1: #{attention_forward.1} parent=0
    #allocation2 [shape = 'u8[1024]{0}', space=vmem, size = 0x400, scoped, tag = 'output window, operand 0, single buffered']
    #allocation3 [shape = 's32[1]{0}', space=sflag, size = 0x4, scoped, tag = 'scoped memory for attention_forward.1']
    #allocation4 [shape = 'u8[1024]{0}', space=vmem, size = 0x400, scoped, tag = 'output window, operand 1, single buffered']
    #allocation5 [shape = 's32[1]{0}', space=sflag, size = 0x4, scoped, tag = 'scoped memory for attention_forward.1']
    %19 = vsyncpa [#allocation3], 0
    %20 = vsyncpa [#allocation5], 0
    // Predicated region
    $region2: #{attention_forward.1} parent=1 // pred_check
      _
    $region3: #{attention_forward.1} parent=1 // pred_check_branch
      %22 = sbr.rel (0) target = $region5
    $region4: #{attention_forward.1} parent=1 // pred_region
      _
    $region5: #{attention_forward.1} parent=1 // pred_fallthru
      _
    // Predicated region
    $region6: #{attention_forward.1} parent=1 // pred_check
      _
    $region7: #{attention_forward.1} parent=1 // pred_check_branch
      %24 = sbr.rel (0) target = $region9
    $region8: #{attention_forward.1} parent=1 // pred_region
      _
    $region9: #{attention_forward.1} parent=1 // pred_fallthru
      _
    // Predicated region
    $region10: #{attention_forward.1} parent=1 // pred_check
      _
    $region11: #{attention_forward.1} parent=1 // pred_check_branch
      %26 = sbr.rel (0) target = $region13
    $region12: #{attention_forward.1} parent=1 // pred_region
      _
    $region13: #{attention_forward.1} parent=1 // pred_fallthru
      _
    // Predicated region
    $region14: #{attention_forward.1} parent=1 // pred_check
      _
    $region15: #{attention_forward.1} parent=1 // pred_check_branch
      %28 = sbr.rel (0) target = $region17
    $region16: #{attention_forward.1} parent=1 // pred_region
      _
    $region17: #{attention_forward.1} parent=1 // pred_fallthru
      _
    // Predicated region
    $region18: #{attention_forward.1} parent=1 // pred_check
      _
    $region19: #{attention_forward.1} parent=1 // pred_check_branch
      %30 = sbr.rel (0) target = $region21
    $region20: #{attention_forward.1} parent=1 // pred_region
      _
    $region21: #{attention_forward.1} parent=1 // pred_fallthru
      _
    // Predicated region
    $region22: #{attention_forward.1} parent=1 // pred_check
      _
    $region23: #{attention_forward.1} parent=1 // pred_check_branch
      %32 = sbr.rel (0) target = $region25
    $region24: #{attention_forward.1} parent=1 // pred_region
      _
    $region25: #{attention_forward.1} parent=1 // pred_fallthru
      _
    // Predicated region
    $region26: #{attention_forward.1} parent=1 // pred_check
      _
    $region27: #{attention_forward.1} parent=1 // pred_check_branch
      %34 = sbr.rel (0) target = $region29
    $region28: #{attention_forward.1} parent=1 // pred_region
      _
    $region29: #{attention_forward.1} parent=1 // pred_fallthru
      _
    // Predicated region
    $region30: #{attention_forward.1} parent=1 // pred_check
      _
    $region31: #{attention_forward.1} parent=1 // pred_check_branch
      %36 = sbr.rel (0) target = $region33
    $region32: #{attention_forward.1} parent=1 // pred_region
      _
    $region33: #{attention_forward.1} parent=1 // pred_fallthru
      _
    // Predicated region
    $region34: #{attention_forward.1} parent=1 // pred_check
      _
    $region35: #{attention_forward.1} parent=1 // pred_check_branch
      %38 = sbr.rel (0) target = $region37
    $region36: #{attention_forward.1} parent=1 // pred_region
      _
    $region37: #{attention_forward.1} parent=1 // pred_fallthru
      _
    // Predicated region
    $region38: #{attention_forward.1} parent=1 // pred_check
      _
    $region39: #{attention_forward.1} parent=1 // pred_check_branch
      %40 = sbr.rel (0) target = $region41
    $region40: #{attention_forward.1} parent=1 // pred_region
      _
    $region41: #{attention_forward.1} parent=1 // pred_fallthru
      _
    // Predicated region
    $region42: #{attention_forward.1} parent=1 // pred_check
      _
    $region43: #{attention_forward.1} parent=1 // pred_check_branch
      %42 = sbr.rel (0) target = $region45
    $region44: #{attention_forward.1} parent=1 // pred_region
      _
    $region45: #{attention_forward.1} parent=1 // pred_fallthru
      _
    %v43 = vld [vmem:[%s1] sm:$0xf]
    %v44 = vld [vmem:[%s3] sm:$0x3]
    %v45 = vld [vmem:[%s0] sm:$0x3]
    %v46 = vld [vmem:[%s5] sm:$0xff]
    %v47 = vld [vmem:[%s5 + $0x8] sm:$0xff]
    %v48 = vld [vmem:[%s5 + $0x10] sm:$0xff]
    %v49 = vld [vmem:[%s5 + $0x18] sm:$0xff]
    %v50 = vld [vmem:[%s5 + $0x20] sm:$0xff]
    %v51 = vld [vmem:[%s5 + $0x28] sm:$0xff]
    %v52 = vld [vmem:[%s5 + $0x30] sm:$0xff]
    %v53 = vld [vmem:[%s5 + $0x38] sm:$0xff]
    %vm54 = vcmask 261120
    %v56 = vsel %vm54, %v45, 0
    %58 = vmatprep.subr.mxu0 0.0
    %59 = vmatpush1.msra.mxu0 0.0
    %60 = vmatprep.subr.mxu0 0.0
    %61 = vmatpush1.msra.mxu0 0.0
    %62 = vmatprep.subr.mxu0 0.0
    %63 = vmatpush1.msra.mxu0 0.0
    %64 = vmatprep.subr.mxu0 0.0
    %65 = vmatpush1.msra.mxu0 0.0
    %66 = vmatprep.subr.mxu0 0.0
    %67 = vmatpush1.msra.mxu0 0.0
    %68 = vmatprep.subr.mxu0 0.0
    %69 = vmatpush1.msra.mxu0 0.0
    %70 = vmatprep.subr.mxu0 0.0
    %71 = vmatpush1.msra.mxu0 0.0
    %72 = vmatprep.subr.mxu0 0.0
    %73 = vmatpush1.msra.mxu0 0.0
    %74 = vmatprep.subr.mxu0 0.0
    %75 = vmatpush1.msra.mxu0 0.0
    %76 = vmatprep.subr.mxu0 0.0
    %77 = vmatpush1.msra.mxu0 0.0
    %78 = vmatprep.subr.mxu0 0.0
    %79 = vmatpush1.msra.mxu0 0.0
    %80 = vmatprep.subr.mxu0 0.0
    %81 = vmatpush1.msra.mxu0 0.0
    %82 = vmatprep.subr.mxu0 %v53
    %83 = vmatpush1.msra.mxu0 %v52
    %84 = vmatprep.subr.mxu0 %v51
    %85 = vmatpush1.msra.mxu0 %v50
    %86 = vmatprep.subr.mxu0 %v49
    %87 = vmatpush1.msra.mxu0 %v48
    %88 = vmatprep.subr.mxu0 %v47
    %89 = vmatpush1.msra.mxu0 %v46
    %90 = vmatprep.subr.mxu0 0.0
    %91 = vmatpush2.msra.mxu0 0.0
    %92 = vmatprep.subr.mxu0 0.0
    %93 = vmatpush2.msra.mxu0 0.0
    %94 = vmatprep.subr.mxu0 0.0
    %95 = vmatpush2.msra.mxu0 0.0
    %96 = vmatprep.subr.mxu0 0.0
    %97 = vmatpush2.msra.mxu0 0.0
    %98 = vmatprep.subr.mxu0 0.0
    %99 = vmatpush2.msra.mxu0 0.0
    %100 = vmatprep.subr.mxu0 0.0
    %101 = vmatpush2.msra.mxu0 0.0
    %102 = vmatprep.subr.mxu0 0.0
    %103 = vmatpush2.msra.mxu0 0.0
    %104 = vmatprep.subr.mxu0 0.0
    %105 = vmatpush2.msra.mxu0 0.0
    %106 = vmatprep.subr.mxu0 0.0
    %107 = vmatpush2.msra.mxu0 0.0
    %108 = vmatprep.subr.mxu0 0.0
    %109 = vmatpush2.msra.mxu0 0.0
    %110 = vmatprep.subr.mxu0 0.0
    %111 = vmatpush2.msra.mxu0 0.0
    %112 = vmatprep.subr.mxu0 0.0
    %113 = vmatpush2.msra.mxu0 0.0
    %114 = vmatprep.subr.mxu0 0.0
    %115 = vmatpush2.msra.mxu0 0.0
    %116 = vmatprep.subr.mxu0 0.0
    %117 = vmatpush2.msra.mxu0 0.0
    %118 = vmatprep.subr.mxu0 0.0
    %119 = vmatpush2.msra.mxu0 0.0
    %120 = vmatprep.subr.mxu0 0.0
    %121 = vmatpush2.msra.mxu0 0.0
    %122 = vmatprep.mubr.f32.mxu0 0.0
    %123 = vmatmul.mubr.f32.gmra.mxu0 %v56
    %v124 = vpop.f32.mrf.mxu0
    %v125 = vadd.f32 0.0, %v124
    %v126 = vpop.f32.mrf.mxu0
    %v127 = vadd.f32 0.0, %v126
    %128 = vdwg.mxu0
    %v129 = vld [vmem:[%s4] sm:$0xff]
    %v130 = vld [vmem:[%s4 + $0x8] sm:$0xff]
    %v131 = vld [vmem:[%s4 + $0x10] sm:$0xff]
    %v132 = vld [vmem:[%s4 + $0x18] sm:$0xff]
    %v133 = vld [vmem:[%s4 + $0x20] sm:$0xff]
    %v134 = vld [vmem:[%s4 + $0x28] sm:$0xff]
    %v135 = vld [vmem:[%s4 + $0x30] sm:$0xff]
    %v136 = vld [vmem:[%s4 + $0x38] sm:$0xff]
    %v137 = vld [vmem:[%s4 + $0x40] sm:$0xff]
    %v138 = vld [vmem:[%s4 + $0x48] sm:$0xff]
    %v139 = vld [vmem:[%s4 + $0x50] sm:$0xff]
    %v140 = vld [vmem:[%s4 + $0x58] sm:$0xff]
    %v141 = vld [vmem:[%s4 + $0x60] sm:$0xff]
    %v142 = vld [vmem:[%s4 + $0x68] sm:$0xff]
    %v143 = vld [vmem:[%s4 + $0x70] sm:$0xff]
    %v144 = vld [vmem:[%s4 + $0x78] sm:$0xff]
    %v145 = vld [vmem:[%s4 + $0x80] sm:$0xff]
    %v146 = vld [vmem:[%s4 + $0x88] sm:$0xff]
    %v147 = vld [vmem:[%s4 + $0x90] sm:$0xff]
    %v148 = vld [vmem:[%s4 + $0x98] sm:$0xff]
    %v149 = vld [vmem:[%s4 + $0xa0] sm:$0xff]
    %v150 = vld [vmem:[%s4 + $0xa8] sm:$0xff]
    %v151 = vld [vmem:[%s4 + $0xb0] sm:$0xff]
    %v152 = vld [vmem:[%s4 + $0xb8] sm:$0xff]
    %v153 = vld [vmem:[%s4 + $0xc0] sm:$0xff]
    %v154 = vld [vmem:[%s4 + $0xc8] sm:$0xff]
    %v155 = vld [vmem:[%s4 + $0xd0] sm:$0xff]
    %v156 = vld [vmem:[%s4 + $0xd8] sm:$0xff]
    %v157 = vld [vmem:[%s4 + $0xe0] sm:$0xff]
    %v158 = vld [vmem:[%s4 + $0xe8] sm:$0xff]
    %v159 = vld [vmem:[%s4 + $0xf0] sm:$0xff]
    %v160 = vld [vmem:[%s4 + $0xf8] sm:$0xff]
    %v161 = vld [vmem:[%s4 + $0x100] sm:$0xff]
    %v162 = vld [vmem:[%s4 + $0x108] sm:$0xff]
    %v163 = vld [vmem:[%s4 + $0x110] sm:$0xff]
    %v164 = vld [vmem:[%s4 + $0x118] sm:$0xff]
    %v165 = vld [vmem:[%s4 + $0x120] sm:$0xff]
    %v166 = vld [vmem:[%s4 + $0x128] sm:$0xff]
    %v167 = vld [vmem:[%s4 + $0x130] sm:$0xff]
    %v168 = vld [vmem:[%s4 + $0x138] sm:$0xff]
    %v169 = vld [vmem:[%s4 + $0x140] sm:$0xff]
    %v170 = vld [vmem:[%s4 + $0x148] sm:$0xff]
    %v171 = vld [vmem:[%s4 + $0x150] sm:$0xff]
    %v172 = vld [vmem:[%s4 + $0x158] sm:$0xff]
    %v173 = vld [vmem:[%s4 + $0x160] sm:$0xff]
    %v174 = vld [vmem:[%s4 + $0x168] sm:$0xff]
    %v175 = vld [vmem:[%s4 + $0x170] sm:$0xff]
    %v176 = vld [vmem:[%s4 + $0x178] sm:$0xff]
    %v177 = vld [vmem:[%s4 + $0x180] sm:$0xff]
    %v178 = vld [vmem:[%s4 + $0x188] sm:$0xff]
    %v179 = vld [vmem:[%s4 + $0x190] sm:$0xff]
    %v180 = vld [vmem:[%s4 + $0x198] sm:$0xff]
    %v181 = vld [vmem:[%s4 + $0x1a0] sm:$0xff]
    %v182 = vld [vmem:[%s4 + $0x1a8] sm:$0xff]
    %v183 = vld [vmem:[%s4 + $0x1b0] sm:$0xff]
    %v184 = vld [vmem:[%s4 + $0x1b8] sm:$0xff]
    %v185 = vld [vmem:[%s4 + $0x1c0] sm:$0xff]
    %v186 = vld [vmem:[%s4 + $0x1c8] sm:$0xff]
    %v187 = vld [vmem:[%s4 + $0x1d0] sm:$0xff]
    %v188 = vld [vmem:[%s4 + $0x1d8] sm:$0xff]
    %v189 = vld [vmem:[%s4 + $0x1e0] sm:$0xff]
    %v190 = vld [vmem:[%s4 + $0x1e8] sm:$0xff]
    %v191 = vld [vmem:[%s4 + $0x1f0] sm:$0xff]
    %v192 = vld [vmem:[%s4 + $0x1f8] sm:$0xff]
    %v193 = vld [vmem:[%s7] sm:$0xff]
    %v194 = vld [vmem:[%s7 + $0x8] sm:$0xff]
    %vm195 = vcmask 64512
    %v197 = vsel %vm195, %v44, 0
    %199 = vmatprep.subr.mxu0 0.0
    %200 = vmatpush1.msra.mxu0 0.0
    %201 = vmatprep.subr.mxu0 0.0
    %202 = vmatpush1.msra.mxu0 0.0
    %203 = vmatprep.subr.mxu0 0.0
    %204 = vmatpush1.msra.mxu0 0.0
    %205 = vmatprep.subr.mxu0 0.0
    %206 = vmatpush1.msra.mxu0 0.0
    %207 = vmatprep.subr.mxu0 0.0
    %208 = vmatpush1.msra.mxu0 0.0
    %209 = vmatprep.subr.mxu0 0.0
    %210 = vmatpush1.msra.mxu0 0.0
    %211 = vmatprep.subr.mxu0 0.0
    %212 = vmatpush1.msra.mxu0 0.0
    %213 = vmatprep.subr.mxu0 0.0
    %214 = vmatpush1.msra.mxu0 0.0
    %215 = vmatprep.subr.mxu0 0.0
    %216 = vmatpush1.msra.mxu0 0.0
    %217 = vmatprep.subr.mxu0 0.0
    %218 = vmatpush1.msra.mxu0 0.0
    %219 = vmatprep.subr.mxu0 0.0
    %220 = vmatpush1.msra.mxu0 0.0
    %221 = vmatprep.subr.mxu0 0.0
    %222 = vmatpush1.msra.mxu0 0.0
    %223 = vmatprep.subr.mxu0 0.0
    %224 = vmatpush1.msra.mxu0 0.0
    %225 = vmatprep.subr.mxu0 0.0
    %226 = vmatpush1.msra.mxu0 0.0
    %227 = vmatprep.subr.mxu0 0.0
    %228 = vmatpush1.msra.mxu0 0.0
    %229 = vmatprep.subr.mxu0 %v194
    %230 = vmatpush1.msra.mxu0 %v193
    %231 = vmatprep.subr.mxu0 0.0
    %232 = vmatpush2.msra.mxu0 0.0
    %233 = vmatprep.subr.mxu0 0.0
    %234 = vmatpush2.msra.mxu0 0.0
    %235 = vmatprep.subr.mxu0 0.0
    %236 = vmatpush2.msra.mxu0 0.0
    %237 = vmatprep.subr.mxu0 0.0
    %238 = vmatpush2.msra.mxu0 0.0
    %239 = vmatprep.subr.mxu0 0.0
    %240 = vmatpush2.msra.mxu0 0.0
    %241 = vmatprep.subr.mxu0 0.0
    %242 = vmatpush2.msra.mxu0 0.0
    %243 = vmatprep.subr.mxu0 0.0
    %244 = vmatpush2.msra.mxu0 0.0
    %245 = vmatprep.subr.mxu0 0.0
    %246 = vmatpush2.msra.mxu0 0.0
    %247 = vmatprep.subr.mxu0 0.0
    %248 = vmatpush2.msra.mxu0 0.0
    %249 = vmatprep.subr.mxu0 0.0
    %250 = vmatpush2.msra.mxu0 0.0
    %251 = vmatprep.subr.mxu0 0.0
    %252 = vmatpush2.msra.mxu0 0.0
    %253 = vmatprep.subr.mxu0 0.0
    %254 = vmatpush2.msra.mxu0 0.0
    %255 = vmatprep.subr.mxu0 0.0
    %256 = vmatpush2.msra.mxu0 0.0
    %257 = vmatprep.subr.mxu0 0.0
    %258 = vmatpush2.msra.mxu0 0.0
    %259 = vmatprep.subr.mxu0 0.0
    %260 = vmatpush2.msra.mxu0 0.0
    %261 = vmatprep.subr.mxu0 0.0
    %262 = vmatpush2.msra.mxu0 0.0
    %263 = vmatprep.mubr.f32.mxu0 0.0
    %264 = vmatmul.mubr.f32.gmra.mxu0 %v197
    %v265 = vpop.f32.mrf.mxu0
    %v266 = vadd.f32 0.0, %v265
    %v267 = vpop.f32.mrf.mxu0
    %v268 = vadd.f32 0.0, %v267
    %269 = vdwg.mxu0
    %v272 = vunpack.c.l.s4 1983009808
    %v273 = vunpack.c.0.s8 %v272
    %v274 = vlaneseq
    %v275 = vshrl.u32 %v274, 7
    %v276 = vsub.s32 %v273, %v275
    %v277 = vrot.slane %v43, %v276
    %v278 = vcombine.high %v277, %v277
    %281 = vmatprep.subr.mxu0 %v160
    %282 = vmatpush1.msra.mxu0 %v159
    %283 = vmatprep.subr.mxu0 %v158
    %284 = vmatpush1.msra.mxu0 %v157
    %285 = vmatprep.subr.mxu0 %v156
    %286 = vmatpush1.msra.mxu0 %v155
    %287 = vmatprep.subr.mxu0 %v154
    %288 = vmatpush1.msra.mxu0 %v153
    %289 = vmatprep.subr.mxu0 %v152
    %290 = vmatpush1.msra.mxu0 %v151
    %291 = vmatprep.subr.mxu0 %v150
    %292 = vmatpush1.msra.mxu0 %v149
    %293 = vmatprep.subr.mxu0 %v148
    %294 = vmatpush1.msra.mxu0 %v147
    %295 = vmatprep.subr.mxu0 %v146
    %296 = vmatpush1.msra.mxu0 %v145
    %297 = vmatprep.subr.mxu0 %v144
    %298 = vmatpush1.msra.mxu0 %v143
    %299 = vmatprep.subr.mxu0 %v142
    %300 = vmatpush1.msra.mxu0 %v141
    %301 = vmatprep.subr.mxu0 %v140
    %302 = vmatpush1.msra.mxu0 %v139
    %303 = vmatprep.subr.mxu0 %v138
    %304 = vmatpush1.msra.mxu0 %v137
    %305 = vmatprep.subr.mxu0 %v136
    %306 = vmatpush1.msra.mxu0 %v135
    %307 = vmatprep.subr.mxu0 %v134
    %308 = vmatpush1.msra.mxu0 %v133
    %309 = vmatprep.subr.mxu0 %v132
    %310 = vmatpush1.msra.mxu0 %v131
    %311 = vmatprep.subr.mxu0 %v130
    %312 = vmatpush1.msra.mxu0 %v129
    %313 = vmatprep.subr.mxu0 %v192
    %314 = vmatpush2.msra.mxu0 %v191
    %315 = vmatprep.subr.mxu0 %v190
    %316 = vmatpush2.msra.mxu0 %v189
    %317 = vmatprep.subr.mxu0 %v188
    %318 = vmatpush2.msra.mxu0 %v187
    %319 = vmatprep.subr.mxu0 %v186
    %320 = vmatpush2.msra.mxu0 %v185
    %321 = vmatprep.subr.mxu0 %v184
    %322 = vmatpush2.msra.mxu0 %v183
    %323 = vmatprep.subr.mxu0 %v182
    %324 = vmatpush2.msra.mxu0 %v181
    %325 = vmatprep.subr.mxu0 %v180
    %326 = vmatpush2.msra.mxu0 %v179
    %327 = vmatprep.subr.mxu0 %v178
    %328 = vmatpush2.msra.mxu0 %v177
    %329 = vmatprep.subr.mxu0 %v176
    %330 = vmatpush2.msra.mxu0 %v175
    %331 = vmatprep.subr.mxu0 %v174
    %332 = vmatpush2.msra.mxu0 %v173
    %333 = vmatprep.subr.mxu0 %v172
    %334 = vmatpush2.msra.mxu0 %v171
    %335 = vmatprep.subr.mxu0 %v170
    %336 = vmatpush2.msra.mxu0 %v169
    %337 = vmatprep.subr.mxu0 %v168
    %338 = vmatpush2.msra.mxu0 %v167
    %339 = vmatprep.subr.mxu0 %v166
    %340 = vmatpush2.msra.mxu0 %v165
    %341 = vmatprep.subr.mxu0 %v164
    %342 = vmatpush2.msra.mxu0 %v163
    %343 = vmatprep.subr.mxu0 %v162
    %344 = vmatpush2.msra.mxu0 %v161
    %345 = vmatprep.mubr.f32.mxu0 %v278
    %346 = vmatmul.mubr.f32.gmra.mxu0 %v277
    %v347 = vpop.f32.mrf.mxu0
    %v348 = vadd.f32 %v125, %v347
    %v349 = vpop.f32.mrf.mxu0
    %v350 = vadd.f32 %v127, %v349
    %351 = vdwg.mxu0
    %v352 = vld [vmem:[%s6] sm:$0x3]
    %v354 = vlaneseq
    %v355 = vshrl.u32 %v354, 7
    %v356 = vsub.s32 0, %v355
    %v357 = vrot.slane %v352, %v356
    %v358 = vlaneseq
    %v359 = vshrl.u32 %v358, 7
    %v360 = vsub.s32 1, %v359
    %v361 = vrot.slane %v352, %v360
    %v364 = vadd.f32 %v348, %v357
    %v365 = vadd.f32 %v350, %v361
    %v366 = vadd.f32 %v364, %v266
    %v367 = vadd.f32 %v365, %v268
    %v368 = vtanh.pop %v366
    %v369 = vtanh.pop %v367
    %v370 = vld [vmem:[%s8] sm:$0xff]
    %v371 = vld [vmem:[%s8 + $0x8] sm:$0xff]
    %v372 = vld [vmem:[%s8 + $0x10] sm:$0xff]
    %v373 = vld [vmem:[%s8 + $0x18] sm:$0xff]
    %v374 = vld [vmem:[%s8 + $0x20] sm:$0xff]
    %v375 = vld [vmem:[%s8 + $0x28] sm:$0xff]
    %v376 = vld [vmem:[%s8 + $0x30] sm:$0xff]
    %v377 = vld [vmem:[%s8 + $0x38] sm:$0xff]
    %v378 = vld [vmem:[%s8 + $0x40] sm:$0xff]
    %v379 = vld [vmem:[%s8 + $0x48] sm:$0xff]
    %v380 = vld [vmem:[%s8 + $0x50] sm:$0xff]
    %v381 = vld [vmem:[%s8 + $0x58] sm:$0xff]
    %v382 = vld [vmem:[%s8 + $0x60] sm:$0xff]
    %v383 = vld [vmem:[%s8 + $0x68] sm:$0xff]
    %v384 = vld [vmem:[%s8 + $0x70] sm:$0xff]
    %v385 = vld [vmem:[%s8 + $0x78] sm:$0xff]
    %v386 = vld [vmem:[%s8 + $0x80] sm:$0xff]
    %v387 = vld [vmem:[%s8 + $0x88] sm:$0xff]
    %v388 = vld [vmem:[%s8 + $0x90] sm:$0xff]
    %v389 = vld [vmem:[%s8 + $0x98] sm:$0xff]
    %v390 = vld [vmem:[%s8 + $0xa0] sm:$0xff]
    %v391 = vld [vmem:[%s8 + $0xa8] sm:$0xff]
    %v392 = vld [vmem:[%s8 + $0xb0] sm:$0xff]
    %v393 = vld [vmem:[%s8 + $0xb8] sm:$0xff]
    %v394 = vld [vmem:[%s8 + $0xc0] sm:$0xff]
    %v395 = vld [vmem:[%s8 + $0xc8] sm:$0xff]
    %v396 = vld [vmem:[%s8 + $0xd0] sm:$0xff]
    %v397 = vld [vmem:[%s8 + $0xd8] sm:$0xff]
    %v398 = vld [vmem:[%s8 + $0xe0] sm:$0xff]
    %v399 = vld [vmem:[%s8 + $0xe8] sm:$0xff]
    %v400 = vld [vmem:[%s8 + $0xf0] sm:$0xff]
    %v401 = vld [vmem:[%s8 + $0xf8] sm:$0xff]
    %402 = vmatprep.subr.mxu0 0.0
    %403 = vmatpush1.msra.mxu0 %v385
    %404 = vmatprep.subr.mxu0 0.0
    %405 = vmatpush1.msra.mxu0 %v384
    %406 = vmatprep.subr.mxu0 0.0
    %407 = vmatpush1.msra.mxu0 %v383
    %408 = vmatprep.subr.mxu0 0.0
    %409 = vmatpush1.msra.mxu0 %v382
    %410 = vmatprep.subr.mxu0 0.0
    %411 = vmatpush1.msra.mxu0 %v381
    %412 = vmatprep.subr.mxu0 0.0
    %413 = vmatpush1.msra.mxu0 %v380
    %414 = vmatprep.subr.mxu0 0.0
    %415 = vmatpush1.msra.mxu0 %v379
    %416 = vmatprep.subr.mxu0 0.0
    %417 = vmatpush1.msra.mxu0 %v378
    %418 = vmatprep.subr.mxu0 0.0
    %419 = vmatpush1.msra.mxu0 %v377
    %420 = vmatprep.subr.mxu0 0.0
    %421 = vmatpush1.msra.mxu0 %v376
    %422 = vmatprep.subr.mxu0 0.0
    %423 = vmatpush1.msra.mxu0 %v375
    %424 = vmatprep.subr.mxu0 0.0
    %425 = vmatpush1.msra.mxu0 %v374
    %426 = vmatprep.subr.mxu0 0.0
    %427 = vmatpush1.msra.mxu0 %v373
    %428 = vmatprep.subr.mxu0 0.0
    %429 = vmatpush1.msra.mxu0 %v372
    %430 = vmatprep.subr.mxu0 0.0
    %431 = vmatpush1.msra.mxu0 %v371
    %432 = vmatprep.subr.mxu0 0.0
    %433 = vmatpush1.msra.mxu0 %v370
    %434 = vmatprep.subr.mxu0 0.0
    %435 = vmatpush2.msra.mxu0 %v401
    %436 = vmatprep.subr.mxu0 0.0
    %437 = vmatpush2.msra.mxu0 %v400
    %438 = vmatprep.subr.mxu0 0.0
    %439 = vmatpush2.msra.mxu0 %v399
    %440 = vmatprep.subr.mxu0 0.0
    %441 = vmatpush2.msra.mxu0 %v398
    %442 = vmatprep.subr.mxu0 0.0
    %443 = vmatpush2.msra.mxu0 %v397
    %444 = vmatprep.subr.mxu0 0.0
    %445 = vmatpush2.msra.mxu0 %v396
    %446 = vmatprep.subr.mxu0 0.0
    %447 = vmatpush2.msra.mxu0 %v395
    %448 = vmatprep.subr.mxu0 0.0
    %449 = vmatpush2.msra.mxu0 %v394
    %450 = vmatprep.subr.mxu0 0.0
    %451 = vmatpush2.msra.mxu0 %v393
    %452 = vmatprep.subr.mxu0 0.0
    %453 = vmatpush2.msra.mxu0 %v392
    %454 = vmatprep.subr.mxu0 0.0
    %455 = vmatpush2.msra.mxu0 %v391
    %456 = vmatprep.subr.mxu0 0.0
    %457 = vmatpush2.msra.mxu0 %v390
    %458 = vmatprep.subr.mxu0 0.0
    %459 = vmatpush2.msra.mxu0 %v389
    %460 = vmatprep.subr.mxu0 0.0
    %461 = vmatpush2.msra.mxu0 %v388
    %462 = vmatprep.subr.mxu0 0.0
    %463 = vmatpush2.msra.mxu0 %v387
    %464 = vmatprep.subr.mxu0 0.0
    %465 = vmatpush2.msra.mxu0 %v386
    %466 = vmatprep.mubr.f32.mxu0 %v369
    %467 = vmatmul.mubr.f32.gmra.mxu0 %v368
    %v468 = vpop.f32.mrf.mxu0
    %v469 = vadd.f32 0.0, %v468
    %v470 = vpop.f32.mrf.mxu0
    %471 = vdwg.mxu0
    %vm472 = vcmask 58368
    %v473 = vsel %vm472, %v469, -inf
    %474 = vmax.xlane.f32.xlu0 %v473
    %v475 = vpop.xlane.xlu0 %474
    %v476 = vsub.f32 %v469, %v475
    %v477 = vmul.f32 %v476, 1.442695
    %v478 = vpow.pop %v477
    %v479 = vld [vmem:[%s2] sm:$0x3]
    %v480 = vmul.f32 %v478, %v479
    %v481 = vsel %vm472, %v480, 0.0
    %482 = vadd.xlane.f32.xlu0 %v481
    %v483 = vpop.xlane.xlu0 %482
    %v484 = vsel %vm472, %v478, 0.0
    %485 = vadd.xlane.f32.xlu0 %v484
    %v486 = vpop.xlane.xlu0 %485
    %v487 = vmul.f32 %v486, 2.220446e-16
    %v488 = vadd.f32 %v483, %v487
    %v489 = vrcp.pop %v488
    %v490 = vmul.f32 %v480, %v489
    %v491 = vld [vmem:[%s9] sm:$0xff]
    %v492 = vld [vmem:[%s9 + $0x8] sm:$0xff]
    %v494 = vsel %vm195, %v490, 0
    %496 = vmatprep.subr.mxu0 0.0
    %497 = vmatpush1.msra.mxu0 0.0
    %498 = vmatprep.subr.mxu0 0.0
    %499 = vmatpush1.msra.mxu0 0.0
    %500 = vmatprep.subr.mxu0 0.0
    %501 = vmatpush1.msra.mxu0 0.0
    %502 = vmatprep.subr.mxu0 0.0
    %503 = vmatpush1.msra.mxu0 0.0
    %504 = vmatprep.subr.mxu0 0.0
    %505 = vmatpush1.msra.mxu0 0.0
    %506 = vmatprep.subr.mxu0 0.0
    %507 = vmatpush1.msra.mxu0 0.0
    %508 = vmatprep.subr.mxu0 0.0
    %509 = vmatpush1.msra.mxu0 0.0
    %510 = vmatprep.subr.mxu0 0.0
    %511 = vmatpush1.msra.mxu0 0.0
    %512 = vmatprep.subr.mxu0 0.0
    %513 = vmatpush1.msra.mxu0 0.0
    %514 = vmatprep.subr.mxu0 0.0
    %515 = vmatpush1.msra.mxu0 0.0
    %516 = vmatprep.subr.mxu0 0.0
    %517 = vmatpush1.msra.mxu0 0.0
    %518 = vmatprep.subr.mxu0 0.0
    %519 = vmatpush1.msra.mxu0 0.0
    %520 = vmatprep.subr.mxu0 0.0
    %521 = vmatpush1.msra.mxu0 0.0
    %522 = vmatprep.subr.mxu0 0.0
    %523 = vmatpush1.msra.mxu0 0.0
    %524 = vmatprep.subr.mxu0 0.0
    %525 = vmatpush1.msra.mxu0 0.0
    %526 = vmatprep.subr.mxu0 %v492
    %527 = vmatpush1.msra.mxu0 %v491
    %528 = vmatprep.subr.mxu0 0.0
    %529 = vmatpush2.msra.mxu0 0.0
    %530 = vmatprep.subr.mxu0 0.0
    %531 = vmatpush2.msra.mxu0 0.0
    %532 = vmatprep.subr.mxu0 0.0
    %533 = vmatpush2.msra.mxu0 0.0
    %534 = vmatprep.subr.mxu0 0.0
    %535 = vmatpush2.msra.mxu0 0.0
    %536 = vmatprep.subr.mxu0 0.0
    %537 = vmatpush2.msra.mxu0 0.0
    %538 = vmatprep.subr.mxu0 0.0
    %539 = vmatpush2.msra.mxu0 0.0
    %540 = vmatprep.subr.mxu0 0.0
    %541 = vmatpush2.msra.mxu0 0.0
    %542 = vmatprep.subr.mxu0 0.0
    %543 = vmatpush2.msra.mxu0 0.0
    %544 = vmatprep.subr.mxu0 0.0
    %545 = vmatpush2.msra.mxu0 0.0
    %546 = vmatprep.subr.mxu0 0.0
    %547 = vmatpush2.msra.mxu0 0.0
    %548 = vmatprep.subr.mxu0 0.0
    %549 = vmatpush2.msra.mxu0 0.0
    %550 = vmatprep.subr.mxu0 0.0
    %551 = vmatpush2.msra.mxu0 0.0
    %552 = vmatprep.subr.mxu0 0.0
    %553 = vmatpush2.msra.mxu0 0.0
    %554 = vmatprep.subr.mxu0 0.0
    %555 = vmatpush2.msra.mxu0 0.0
    %556 = vmatprep.subr.mxu0 0.0
    %557 = vmatpush2.msra.mxu0 0.0
    %558 = vmatprep.subr.mxu0 0.0
    %559 = vmatpush2.msra.mxu0 0.0
    %560 = vmatprep.mubr.f32.mxu0 0.0
    %561 = vmatmul.mubr.f32.gmra.mxu0 %v494
    %v562 = vpop.f32.mrf.mxu0
    %v563 = vadd.f32 0.0, %v562
    %v564 = vpop.f32.mrf.mxu0
    %v565 = vadd.f32 0.0, %v564
    %566 = vdwg.mxu0
    %v567 = vmul.f32 %v563, %v277
    %v568 = vmul.f32 %v565, %v278
    %v569 = vld [vmem:[%s10] sm:$0xff]
    %v570 = vld [vmem:[%s10 + $0x8] sm:$0xff]
    %v571 = vld [vmem:[%s10 + $0x10] sm:$0xff]
    %v572 = vld [vmem:[%s10 + $0x18] sm:$0xff]
    %v573 = vld [vmem:[%s10 + $0x20] sm:$0xff]
    %v574 = vld [vmem:[%s10 + $0x28] sm:$0xff]
    %v575 = vld [vmem:[%s10 + $0x30] sm:$0xff]
    %v576 = vld [vmem:[%s10 + $0x38] sm:$0xff]
    %v577 = vld [vmem:[%s10 + $0x40] sm:$0xff]
    %v578 = vld [vmem:[%s10 + $0x48] sm:$0xff]
    %v579 = vld [vmem:[%s10 + $0x50] sm:$0xff]
    %v580 = vld [vmem:[%s10 + $0x58] sm:$0xff]
    %v581 = vld [vmem:[%s10 + $0x60] sm:$0xff]
    %v582 = vld [vmem:[%s10 + $0x68] sm:$0xff]
    %v583 = vld [vmem:[%s10 + $0x70] sm:$0xff]
    %v584 = vld [vmem:[%s10 + $0x78] sm:$0xff]
    %v585 = vld [vmem:[%s10 + $0x80] sm:$0xff]
    %v586 = vld [vmem:[%s10 + $0x88] sm:$0xff]
    %v587 = vld [vmem:[%s10 + $0x90] sm:$0xff]
    %v588 = vld [vmem:[%s10 + $0x98] sm:$0xff]
    %v589 = vld [vmem:[%s10 + $0xa0] sm:$0xff]
    %v590 = vld [vmem:[%s10 + $0xa8] sm:$0xff]
    %v591 = vld [vmem:[%s10 + $0xb0] sm:$0xff]
    %v592 = vld [vmem:[%s10 + $0xb8] sm:$0xff]
    %v593 = vld [vmem:[%s10 + $0xc0] sm:$0xff]
    %v594 = vld [vmem:[%s10 + $0xc8] sm:$0xff]
    %v595 = vld [vmem:[%s10 + $0xd0] sm:$0xff]
    %v596 = vld [vmem:[%s10 + $0xd8] sm:$0xff]
    %v597 = vld [vmem:[%s10 + $0xe0] sm:$0xff]
    %v598 = vld [vmem:[%s10 + $0xe8] sm:$0xff]
    %v599 = vld [vmem:[%s10 + $0xf0] sm:$0xff]
    %v600 = vld [vmem:[%s10 + $0xf8] sm:$0xff]
    %601 = vmatprep.subr.mxu0 0.0
    %602 = vmatpush1.msra.mxu0 %v584
    %603 = vmatprep.subr.mxu0 0.0
    %604 = vmatpush1.msra.mxu0 %v583
    %605 = vmatprep.subr.mxu0 0.0
    %606 = vmatpush1.msra.mxu0 %v582
    %607 = vmatprep.subr.mxu0 0.0
    %608 = vmatpush1.msra.mxu0 %v581
    %609 = vmatprep.subr.mxu0 0.0
    %610 = vmatpush1.msra.mxu0 %v580
    %611 = vmatprep.subr.mxu0 0.0
    %612 = vmatpush1.msra.mxu0 %v579
    %613 = vmatprep.subr.mxu0 0.0
    %614 = vmatpush1.msra.mxu0 %v578
    %615 = vmatprep.subr.mxu0 0.0
    %616 = vmatpush1.msra.mxu0 %v577
    %617 = vmatprep.subr.mxu0 0.0
    %618 = vmatpush1.msra.mxu0 %v576
    %619 = vmatprep.subr.mxu0 0.0
    %620 = vmatpush1.msra.mxu0 %v575
    %621 = vmatprep.subr.mxu0 0.0
    %622 = vmatpush1.msra.mxu0 %v574
    %623 = vmatprep.subr.mxu0 0.0
    %624 = vmatpush1.msra.mxu0 %v573
    %625 = vmatprep.subr.mxu0 0.0
    %626 = vmatpush1.msra.mxu0 %v572
    %627 = vmatprep.subr.mxu0 0.0
    %628 = vmatpush1.msra.mxu0 %v571
    %629 = vmatprep.subr.mxu0 0.0
    %630 = vmatpush1.msra.mxu0 %v570
    %631 = vmatprep.subr.mxu0 0.0
    %632 = vmatpush1.msra.mxu0 %v569
    %633 = vmatprep.subr.mxu0 0.0
    %634 = vmatpush2.msra.mxu0 %v600
    %635 = vmatprep.subr.mxu0 0.0
    %636 = vmatpush2.msra.mxu0 %v599
    %637 = vmatprep.subr.mxu0 0.0
    %638 = vmatpush2.msra.mxu0 %v598
    %639 = vmatprep.subr.mxu0 0.0
    %640 = vmatpush2.msra.mxu0 %v597
    %641 = vmatprep.subr.mxu0 0.0
    %642 = vmatpush2.msra.mxu0 %v596
    %643 = vmatprep.subr.mxu0 0.0
    %644 = vmatpush2.msra.mxu0 %v595
    %645 = vmatprep.subr.mxu0 0.0
    %646 = vmatpush2.msra.mxu0 %v594
    %647 = vmatprep.subr.mxu0 0.0
    %648 = vmatpush2.msra.mxu0 %v593
    %649 = vmatprep.subr.mxu0 0.0
    %650 = vmatpush2.msra.mxu0 %v592
    %651 = vmatprep.subr.mxu0 0.0
    %652 = vmatpush2.msra.mxu0 %v591
    %653 = vmatprep.subr.mxu0 0.0
    %654 = vmatpush2.msra.mxu0 %v590
    %655 = vmatprep.subr.mxu0 0.0
    %656 = vmatpush2.msra.mxu0 %v589
    %657 = vmatprep.subr.mxu0 0.0
    %658 = vmatpush2.msra.mxu0 %v588
    %659 = vmatprep.subr.mxu0 0.0
    %660 = vmatpush2.msra.mxu0 %v587
    %661 = vmatprep.subr.mxu0 0.0
    %662 = vmatpush2.msra.mxu0 %v586
    %663 = vmatprep.subr.mxu0 0.0
    %664 = vmatpush2.msra.mxu0 %v585
    %665 = vmatprep.mubr.f32.mxu0 %v568
    %666 = vmatmul.mubr.f32.gmra.mxu0 %v567
    %v667 = vpop.f32.mrf.mxu0
    %v668 = vadd.f32 0.0, %v667
    %v669 = vpop.f32.mrf.mxu0
    %670 = vdwg.mxu0
    %vm671 = vcmask 254976
    %672 = vst.msk [vmem:[#allocation2] sm:$0x3] %vm671, %v668
    %673 = vst.msk [vmem:[#allocation4] sm:$0x3] %vm472, %v490
    %v674 = vadd.f32 %v44, %v490
    %675 = vst.msk [vmem:[%s13] sm:$0x3] %vm472, %v674
    // Predicated region
    $region46: #{attention_forward.1} parent=1 // pred_check
      _
    $region47: #{attention_forward.1} parent=1 // pred_check_branch
      %677 = sbr.rel (0) target = $region49
    $region48: #{attention_forward.1} parent=1 // pred_region
      %s679 = ssub.s32 32, 32
      %680 = vsyncadd [#allocation3], %s679
      %s682 = sshll.u32 [#allocation2], 4
      %s683 = int_to_ptr.vmem [resolvable:$true] %s682
      %685 = dma.vmem_to_hbm [thread:$0]  %s683, 32, %s11, [#allocation3]
    $region49: #{attention_forward.1} parent=1 // pred_fallthru
      _
    // Predicated region
    $region50: #{attention_forward.1} parent=1 // pred_check
      _
    $region51: #{attention_forward.1} parent=1 // pred_check_branch
      %687 = sbr.rel (0) target = $region53
    $region52: #{attention_forward.1} parent=1 // pred_region
      %s689 = ssub.s32 32, 32
      %690 = vsyncadd [#allocation5], %s689
      %s692 = sshll.u32 [#allocation4], 4
      %s693 = int_to_ptr.vmem [resolvable:$true] %s692
      %695 = dma.vmem_to_hbm [thread:$0]  %s693, 32, %s12, [#allocation5]
    $region53: #{attention_forward.1} parent=1 // pred_fallthru
      _
    // Predicated region
    $region54: #{attention_forward.1} parent=1 // pred_check
      _
    $region55: #{attention_forward.1} parent=1 // pred_check_branch
      %697 = sbr.rel (0) target = $region57
    $region56: #{attention_forward.1} parent=1 // pred_region
      _
    $region57: #{attention_forward.1} parent=1 // pred_fallthru
      _
    // Predicated region
    $region58: #{attention_forward.1} parent=1 // pred_check
      _
    $region59: #{attention_forward.1} parent=1 // pred_check_branch
      %699 = sbr.rel (0) target = $region61
    $region60: #{attention_forward.1} parent=1 // pred_region
      %700 = dma.done [#allocation3], 32
    $region61: #{attention_forward.1} parent=1 // pred_fallthru
      _
    // Predicated region
    $region62: #{attention_forward.1} parent=1 // pred_check
      _
    $region63: #{attention_forward.1} parent=1 // pred_check_branch
      %702 = sbr.rel (0) target = $region65
    $region64: #{attention_forward.1} parent=1 // pred_region
      %703 = dma.done [#allocation5], 32
    $region65: #{attention_forward.1} parent=1 // pred_fallthru
      _
    // Predicated region
    $region66: #{attention_forward.1} parent=1 // pred_check
      _
    $region67: #{attention_forward.1} parent=1 // pred_check_branch
      %705 = sbr.rel (0) target = $region69
    $region68: #{attention_forward.1} parent=1 // pred_region
      _
    $region69: #{attention_forward.1} parent=1 // pred_fallthru
      _
    %706 = vsyncpa [#allocation3], 1
    %707 = vsyncpa [#allocation5], 1

</llo_original>
